<compile_context>
chip_gen: v6e
topology: v6e:2x2x1
jax: 0.10.0
libtpu: 0.0.40
codegen_flags: <defaults>
</compile_context>

<pallas_src>
import functools

import jax
import jax.numpy as jnp
import numpy as np
from jax.experimental import pallas as pl
from jax.experimental.pallas import tpu as pltpu


def _round_up(x, m):
    return (x + m - 1) // m * m


# ----------------------------------------------------------------------------
# Kernel
# ----------------------------------------------------------------------------
def _tree_lstm_kernel(x_ref, hl_ref, hr_ref, cl_ref, cr_ref,
                      wx_ref, whl_ref, whr_ref, b_ref,
                      h_ref, c_ref, *, h_dim):
    H = h_dim
    f32 = jnp.float32

    # Three accumulating MXU passes against the row-split fused weights,
    # f32 accumulation regardless of storage dtype.
    z = jnp.dot(x_ref[...], wx_ref[...], preferred_element_type=f32)
    z = z + jnp.dot(hl_ref[...], whl_ref[...], preferred_element_type=f32)
    z = z + jnp.dot(hr_ref[...], whr_ref[...], preferred_element_type=f32)
    z = z + b_ref[...].astype(f32)

    # Gate columns packed at H granularity: [ i | o | u | fl | fr ].
    i = jax.nn.sigmoid(z[:, 0 * H:1 * H])
    o = jax.nn.sigmoid(z[:, 1 * H:2 * H])
    u = jnp.tanh(z[:, 2 * H:3 * H])
    fl = jax.nn.sigmoid(z[:, 3 * H:4 * H])
    fr = jax.nn.sigmoid(z[:, 4 * H:5 * H])

    # f32 epilogue (v5e VPU/EUP have no bf16 path).
    c = i * u + fl * cl_ref[...].astype(f32) + fr * cr_ref[...].astype(f32)
    h = o * jnp.tanh(c)

    h_ref[...] = h.astype(h_ref.dtype)
    c_ref[...] = c.astype(c_ref.dtype)


# ----------------------------------------------------------------------------
# Wrapper
# ----------------------------------------------------------------------------
def binary_tree_lstm_cell(x, hl, hr, cl, cr, fused, *, max_tile_b=512):
    """Fused BinaryTreeLSTMCell forward.

    Returns (h, c), each of shape (B, h_dim) in the fused storage dtype, so
    they can feed the next tree level directly (no re-layout needed).
    """
    B, in_dim = x.shape
    H = fused["h_dim"]
    N = 5 * H
    wx, whl, whr, b = fused["wx"], fused["whl"], fused["whr"], fused["b"]
    dtype = wx.dtype

    # Cast activations to the storage dtype of the fused weights (no-op for
    # f32; halves DMA bytes when the bf16 path is used end to end).
    x, hl, hr, cl, cr = (a.astype(dtype) for a in (x, hl, hr, cl, cr))

    # Batch tiling.  bf16 needs 16-row sublane tiles (v5e packing); f32 needs 8.
    sub = 16 if dtype == jnp.bfloat16 else 8
    tile_b = max(sub, min(max_tile_b, _round_up(B, sub)))
    steps = pl.cdiv(B, tile_b)
    # v7x megacore heuristic: prefer an even number of grid steps so the two
    # TensorCores stay load balanced on the "parallel" batch axis.
    if steps > 1 and steps % 2 == 1:
        tile_b = max(sub, _round_up(pl.cdiv(B, steps + 1), sub))
        steps = pl.cdiv(B, tile_b)
    grid = (steps,)

    itemsize = jnp.dtype(dtype).itemsize
    w_bytes = (wx.size + whl.size + whr.size + b.size) * itemsize
    act_bytes = tile_b * (in_dim + 4 * H) * itemsize
    out_bytes = tile_b * 2 * H * itemsize
    # Double-buffered blocks + weights + a few f32 copies of z as headroom.
    vmem_bytes = 2 * (act_bytes + out_bytes + w_bytes) + 4 * tile_b * N * 4
    vmem_limit = int(min(64 << 20, max(8 << 20, vmem_bytes)))

    cost = pl.CostEstimate(
        flops=2 * B * (in_dim + 2 * H) * N,
        transcendentals=6 * B * H,   # 4 sigmoid + 2 tanh arrays of width H
        bytes_accessed=(x.size + hl.size + hr.size + cl.size + cr.size) * itemsize
        + w_bytes + 2 * B * H * itemsize,
    )

    kernel = functools.partial(_tree_lstm_kernel, h_dim=H)

    h, c = pl.pallas_call(
        kernel,
        out_shape=(jax.ShapeDtypeStruct((B, H), dtype),
                   jax.ShapeDtypeStruct((B, H), dtype)),
        grid=grid,
        in_specs=[
            pl.BlockSpec((tile_b, in_dim), lambda i: (i, 0)),   # x
            pl.BlockSpec((tile_b, H), lambda i: (i, 0)),        # hl
            pl.BlockSpec((tile_b, H), lambda i: (i, 0)),        # hr
            pl.BlockSpec((tile_b, H), lambda i: (i, 0)),        # cl
            pl.BlockSpec((tile_b, H), lambda i: (i, 0)),        # cr
            pl.BlockSpec((in_dim, N), lambda i: (0, 0)),        # W_x  (resident)
            pl.BlockSpec((H, N), lambda i: (0, 0)),             # W_hl (resident)
            pl.BlockSpec((H, N), lambda i: (0, 0)),             # W_hr (resident)
            pl.BlockSpec((1, N), lambda i: (0, 0)),             # fused bias
        ],
        out_specs=(
            pl.BlockSpec((tile_b, H), lambda i: (i, 0)),        # h
            pl.BlockSpec((tile_b, H), lambda i: (i, 0)),        # c
        ),
        compiler_params=pltpu.CompilerParams(
            dimension_semantics=("parallel",),
            vmem_limit_bytes=vmem_limit),
        cost_estimate=cost,
    )(x, hl, hr, cl, cr, wx, whl, whr, b)
    return h, c


# ----------------------------------------------------------------------------
# Parameters
# ----------------------------------------------------------------------------
def init_params(key, in_dim, h_dim, dtype=jnp.float32):
    """PyTorch-style nn.Linear init; weights stored (in_features, out_features)."""
    keys = jax.random.split(key, 16)

    def linear(kw, kb, fan_in, fan_out):
        bound = 1.0 / (fan_in ** 0.5)
        w = jax.random.uniform(kw, (fan_in, fan_out), dtype, -bound, bound)
        b = jax.random.uniform(kb, (1, fan_out), dtype, -bound, bound)
        return w, b

    p = {}
    p["w_iou_x"], p["b_iou_x"] = linear(keys[0], keys[1], in_dim, 3 * h_dim)
    p["w_iou_hl"], p["b_iou_hl"] = linear(keys[2], keys[3], h_dim, 3 * h_dim)
    p["w_iou_hr"], p["b_iou_hr"] = linear(keys[4], keys[5], h_dim, 3 * h_dim)
    p["w_fx"], p["b_fx"] = linear(keys[6], keys[7], in_dim, h_dim)
    p["w_f00"], p["b_f00"] = linear(keys[8], keys[9], h_dim, h_dim)
    p["w_f01"], p["b_f01"] = linear(keys[10], keys[11], h_dim, h_dim)
    p["w_f10"], p["b_f10"] = linear(keys[12], keys[13], h_dim, h_dim)
    p["w_f11"], p["b_f11"] = linear(keys[14], keys[15], h_dim, h_dim)
    return p


def fuse_params(params, in_dim, h_dim, param_dtype=None):
    """Fuse the 9 Linears into three row-split weight blocks + one bias.

    Column layout (width 5*H, packed at H granularity): [ i | o | u | fl | fr ].
    Row split: W_x multiplies x, W_hl multiplies hl, W_hr multiplies hr.
      fl column block: f_x(x) + f_h[0][0](hr) + f_h[0][1](hl)
      fr column block: f_x(x) + f_h[1][0](hr) + f_h[1][1](hl)
    Use param_dtype=jnp.bfloat16 for bf16 storage (f32 accumulation in-kernel).
    """
    dtype = param_dtype if param_dtype is not None else params["w_iou_x"].dtype

    wx = jnp.concatenate([params["w_iou_x"], params["w_fx"], params["w_fx"]], axis=1)
    whl = jnp.concatenate([params["w_iou_hl"], params["w_f01"], params["w_f11"]], axis=1)
    whr = jnp.concatenate([params["w_iou_hr"], params["w_f00"], params["w_f10"]], axis=1)

    b_iou = params["b_iou_x"] + params["b_iou_hl"] + params["b_iou_hr"]
    b_fl = params["b_fx"] + params["b_f00"] + params["b_f01"]
    b_fr = params["b_fx"] + params["b_f10"] + params["b_f11"]
    b = jnp.concatenate([b_iou, b_fl, b_fr], axis=1)

    return {"wx": wx.astype(dtype), "whl": whl.astype(dtype),
            "whr": whr.astype(dtype), "b": b.astype(dtype),
            "in_dim": in_dim, "h_dim": h_dim}


# ----------------------------------------------------------------------------
# Pure-JAX reference (mirrors the PyTorch forward)
# ----------------------------------------------------------------------------
def reference(x, hl, hr, cl, cr, p):
    iou = (x @ p["w_iou_x"] + p["b_iou_x"]
           + hl @ p["w_iou_hl"] + p["b_iou_hl"]
           + hr @ p["w_iou_hr"] + p["b_iou_hr"])
    H = hl.shape[1]
    i = jax.nn.sigmoid(iou[:, :H])
    o = jax.nn.sigmoid(iou[:, H:2 * H])
    u = jnp.tanh(iou[:, 2 * H:])
    fx = x @ p["w_fx"] + p["b_fx"]
    fl = jax.nn.sigmoid(fx + hr @ p["w_f00"] + p["b_f00"] + hl @ p["w_f01"] + p["b_f01"])
    fr = jax.nn.sigmoid(fx + hr @ p["w_f10"] + p["b_f10"] + hl @ p["w_f11"] + p["b_f11"])
    c = i * u + fl * cl + fr * cr
    h = o * jnp.tanh(c)
    return h, c


if __name__ == "__main__":
    IN_DIM, H_DIM = 48, 32

    key = jax.random.PRNGKey(0)
    k_p, k_data = jax.random.split(key)
    params = init_params(k_p, IN_DIM, H_DIM, jnp.float32)
    fused_f32 = fuse_params(params, IN_DIM, H_DIM)
    fused_bf16 = fuse_params(params, IN_DIM, H_DIM, param_dtype=jnp.bfloat16)

    def make_inputs(k, B):
        ks = jax.random.split(k, 5)
        x = jax.random.normal(ks[0], (B, IN_DIM), jnp.float32)
        hl = jax.random.normal(ks[1], (B, H_DIM), jnp.float32)
        hr = jax.random.normal(ks[2], (B, H_DIM), jnp.float32)
        cl = jax.random.normal(ks[3], (B, H_DIM), jnp.float32)
        cr = jax.random.normal(ks[4], (B, H_DIM), jnp.float32)
        return x, hl, hr, cl, cr

    # 1) single exact tile; 2) multi-step grid with even-step heuristic and a
    #    partial last block; 3) bf16 storage path (f32 accumulate/epilogue).
    cases = (
        (8, fused_f32, 512, jnp.float32, 2e-5),
        (300, fused_f32, 128, jnp.float32, 2e-5),
        (300, fused_bf16, 160, jnp.bfloat16, 5e-2),
    )
    for B, fused, tile, in_dtype, tol in cases:
        kb = jax.random.fold_in(k_data, B)
        x, hl, hr, cl, cr = make_inputs(kb, B)

        xi, hli, hri, cli, cri = (a.astype(in_dtype) for a in (x, hl, hr, cl, cr))
        h, c = binary_tree_lstm_cell(xi, hli, hri, cli, cri, fused, max_tile_b=tile)
        jax.block_until_ready((h, c))

        # Reference in f32 on the (possibly bf16-rounded) inputs.
        xr, hlr, hrr, clr, crr = (a.astype(jnp.float32) for a in (xi, hli, hri, cli, cri))
        h_ref, c_ref = reference(xr, hlr, hrr, clr, crr, params)
        np.testing.assert_allclose(np.asarray(h, dtype=np.float32),
                                   np.asarray(h_ref), rtol=tol, atol=tol)
        np.testing.assert_allclose(np.asarray(c, dtype=np.float32),
                                   np.asarray(c_ref), rtol=tol, atol=tol)

    print("KERNEL_OK")
</pallas_src>

<mosaic_0001>
module attributes {stable_mosaic.version = 11 : i64} {
  func.func @_tree_lstm_kernel(%arg0: i32, %arg1: memref<8x48xf32, #tpu.memory_space<vmem>>, %arg2: memref<8x32xf32, #tpu.memory_space<vmem>>, %arg3: memref<8x32xf32, #tpu.memory_space<vmem>>, %arg4: memref<8x32xf32, #tpu.memory_space<vmem>>, %arg5: memref<8x32xf32, #tpu.memory_space<vmem>>, %arg6: memref<48x160xf32, #tpu.memory_space<vmem>>, %arg7: memref<32x160xf32, #tpu.memory_space<vmem>>, %arg8: memref<32x160xf32, #tpu.memory_space<vmem>>, %arg9: memref<1x160xf32, #tpu.memory_space<vmem>>, %arg10: memref<8x32xf32, #tpu.memory_space<vmem>>, %arg11: memref<8x32xf32, #tpu.memory_space<vmem>>) attributes {dimension_semantics = [#tpu.dimension_semantics<parallel>], iteration_bounds = array<i64: 1>, scalar_prefetch = 0 : i64, scratch_operands = 0 : i64, tpu.core_type = #tpu.core_type<tc>, window_params = [{transform_indices = @transform_0, window_bounds = array<i64: 8, 48>}, {transform_indices = @transform_1, window_bounds = array<i64: 8, 32>}, {transform_indices = @transform_2, window_bounds = array<i64: 8, 32>}, {transform_indices = @transform_3, window_bounds = array<i64: 8, 32>}, {transform_indices = @transform_4, window_bounds = array<i64: 8, 32>}, {pipeline_mode = #tpu.pipeline_mode<synchronous>, transform_indices = @transform_5, window_bounds = array<i64: 48, 160>}, {pipeline_mode = #tpu.pipeline_mode<synchronous>, transform_indices = @transform_6, window_bounds = array<i64: 32, 160>}, {pipeline_mode = #tpu.pipeline_mode<synchronous>, transform_indices = @transform_7, window_bounds = array<i64: 32, 160>}, {pipeline_mode = #tpu.pipeline_mode<synchronous>, transform_indices = @transform_8, window_bounds = array<i64: 1, 160>}, {transform_indices = @transform_9, window_bounds = array<i64: 8, 32>}, {transform_indices = @transform_10, window_bounds = array<i64: 8, 32>}]} {
    %c0 = arith.constant 0 : index
    %c0_0 = arith.constant 0 : index
    %0 = vector.load %arg1[%c0, %c0_0] : memref<8x48xf32, #tpu.memory_space<vmem>>, vector<8x48xf32>
    %c0_1 = arith.constant 0 : index
    %c0_2 = arith.constant 0 : index
    %1 = vector.load %arg6[%c0_1, %c0_2] : memref<48x160xf32, #tpu.memory_space<vmem>>, vector<48x160xf32>
    %cst = arith.constant dense<0.000000e+00> : vector<8x160xf32>
    %2 = tpu.matmul %0, %1, %cst {dimension_numbers = #tpu.dot_dimension_numbers<[1], [0], [0], [1], [0, 0, 1, 1], [], []>} : vector<8x48xf32>, vector<48x160xf32>, vector<8x160xf32> -> vector<8x160xf32>
    %c0_3 = arith.constant 0 : index
    %c0_4 = arith.constant 0 : index
    %3 = vector.load %arg2[%c0_3, %c0_4] : memref<8x32xf32, #tpu.memory_space<vmem>>, vector<8x32xf32>
    %c0_5 = arith.constant 0 : index
    %c0_6 = arith.constant 0 : index
    %4 = vector.load %arg7[%c0_5, %c0_6] : memref<32x160xf32, #tpu.memory_space<vmem>>, vector<32x160xf32>
    %cst_7 = arith.constant dense<0.000000e+00> : vector<8x160xf32>
    %5 = tpu.matmul %3, %4, %cst_7 {dimension_numbers = #tpu.dot_dimension_numbers<[1], [0], [0], [1], [0, 0, 1, 1], [], []>} : vector<8x32xf32>, vector<32x160xf32>, vector<8x160xf32> -> vector<8x160xf32>
    %6 = arith.addf %2, %5 : vector<8x160xf32>
    %c0_8 = arith.constant 0 : index
    %c0_9 = arith.constant 0 : index
    %7 = vector.load %arg3[%c0_8, %c0_9] : memref<8x32xf32, #tpu.memory_space<vmem>>, vector<8x32xf32>
    %c0_10 = arith.constant 0 : index
    %c0_11 = arith.constant 0 : index
    %8 = vector.load %arg8[%c0_10, %c0_11] : memref<32x160xf32, #tpu.memory_space<vmem>>, vector<32x160xf32>
    %cst_12 = arith.constant dense<0.000000e+00> : vector<8x160xf32>
    %9 = tpu.matmul %7, %8, %cst_12 {dimension_numbers = #tpu.dot_dimension_numbers<[1], [0], [0], [1], [0, 0, 1, 1], [], []>} : vector<8x32xf32>, vector<32x160xf32>, vector<8x160xf32> -> vector<8x160xf32>
    %10 = arith.addf %6, %9 : vector<8x160xf32>
    %c0_13 = arith.constant 0 : index
    %c0_14 = arith.constant 0 : index
    %11 = vector.load %arg9[%c0_13, %c0_14] : memref<1x160xf32, #tpu.memory_space<vmem>>, vector<1x160xf32>
    %12 = vector.broadcast %11 : vector<1x160xf32> to vector<8x160xf32>
    %13 = arith.addf %10, %12 : vector<8x160xf32>
    %14 = vector.extract_strided_slice %13 {offsets = [0, 0], sizes = [8, 32], strides = [1, 1]} : vector<8x160xf32> to vector<8x32xf32>
    %15 = arith.negf %14 : vector<8x32xf32>
    %16 = math.exp %15 : vector<8x32xf32>
    %cst_15 = arith.constant 1.000000e+00 : f32
    %17 = vector.broadcast %cst_15 : f32 to vector<8x32xf32>
    %18 = arith.addf %17, %16 : vector<8x32xf32>
    %19 = arith.divf %17, %18 : vector<8x32xf32>
    %20 = vector.extract_strided_slice %13 {offsets = [0, 32], sizes = [8, 32], strides = [1, 1]} : vector<8x160xf32> to vector<8x32xf32>
    %21 = arith.negf %20 : vector<8x32xf32>
    %22 = math.exp %21 : vector<8x32xf32>
    %cst_16 = arith.constant 1.000000e+00 : f32
    %23 = vector.broadcast %cst_16 : f32 to vector<8x32xf32>
    %24 = arith.addf %23, %22 : vector<8x32xf32>
    %25 = arith.divf %23, %24 : vector<8x32xf32>
    %26 = vector.extract_strided_slice %13 {offsets = [0, 64], sizes = [8, 32], strides = [1, 1]} : vector<8x160xf32> to vector<8x32xf32>
    %27 = math.tanh %26 : vector<8x32xf32>
    %28 = vector.extract_strided_slice %13 {offsets = [0, 96], sizes = [8, 32], strides = [1, 1]} : vector<8x160xf32> to vector<8x32xf32>
    %29 = arith.negf %28 : vector<8x32xf32>
    %30 = math.exp %29 : vector<8x32xf32>
    %cst_17 = arith.constant 1.000000e+00 : f32
    %31 = vector.broadcast %cst_17 : f32 to vector<8x32xf32>
    %32 = arith.addf %31, %30 : vector<8x32xf32>
    %33 = arith.divf %31, %32 : vector<8x32xf32>
    %34 = vector.extract_strided_slice %13 {offsets = [0, 128], sizes = [8, 32], strides = [1, 1]} : vector<8x160xf32> to vector<8x32xf32>
    %35 = arith.negf %34 : vector<8x32xf32>
    %36 = math.exp %35 : vector<8x32xf32>
    %cst_18 = arith.constant 1.000000e+00 : f32
    %37 = vector.broadcast %cst_18 : f32 to vector<8x32xf32>
    %38 = arith.addf %37, %36 : vector<8x32xf32>
    %39 = arith.divf %37, %38 : vector<8x32xf32>
    %40 = arith.mulf %19, %27 : vector<8x32xf32>
    %c0_19 = arith.constant 0 : index
    %c0_20 = arith.constant 0 : index
    %41 = vector.load %arg4[%c0_19, %c0_20] : memref<8x32xf32, #tpu.memory_space<vmem>>, vector<8x32xf32>
    %42 = arith.mulf %33, %41 : vector<8x32xf32>
    %43 = arith.addf %40, %42 : vector<8x32xf32>
    %c0_21 = arith.constant 0 : index
    %c0_22 = arith.constant 0 : index
    %44 = vector.load %arg5[%c0_21, %c0_22] : memref<8x32xf32, #tpu.memory_space<vmem>>, vector<8x32xf32>
    %45 = arith.mulf %39, %44 : vector<8x32xf32>
    %46 = arith.addf %43, %45 : vector<8x32xf32>
    %47 = math.tanh %46 : vector<8x32xf32>
    %48 = arith.mulf %25, %47 : vector<8x32xf32>
    %c0_23 = arith.constant 0 : index
    %c0_24 = arith.constant 0 : index
    %49 = vector.load %arg10[%c0_23, %c0_24] : memref<8x32xf32, #tpu.memory_space<vmem>>, vector<8x32xf32>
    tpu.vector_store %arg10[%c0_23, %c0_24], %48 {strides = array<i32>} : memref<8x32xf32, #tpu.memory_space<vmem>>, vector<8x32xf32>,
    %c0_25 = arith.constant 0 : index
    %c0_26 = arith.constant 0 : index
    %50 = vector.load %arg11[%c0_25, %c0_26] : memref<8x32xf32, #tpu.memory_space<vmem>>, vector<8x32xf32>
    tpu.vector_store %arg11[%c0_25, %c0_26], %46 {strides = array<i32>} : memref<8x32xf32, #tpu.memory_space<vmem>>, vector<8x32xf32>,
    return
  }
  func.func @transform_0(%arg0: i32) -> (i32, i32) {
    %c0_i32 = arith.constant 0 : i32
    %c0_i32_0 = arith.constant 0 : i32
    return %arg0, %c0_i32 : i32, i32
  }
  func.func @transform_1(%arg0: i32) -> (i32, i32) {
    %c0_i32 = arith.constant 0 : i32
    %c0_i32_0 = arith.constant 0 : i32
    return %arg0, %c0_i32 : i32, i32
  }
  func.func @transform_2(%arg0: i32) -> (i32, i32) {
    %c0_i32 = arith.constant 0 : i32
    %c0_i32_0 = arith.constant 0 : i32
    return %arg0, %c0_i32 : i32, i32
  }
  func.func @transform_3(%arg0: i32) -> (i32, i32) {
    %c0_i32 = arith.constant 0 : i32
    %c0_i32_0 = arith.constant 0 : i32
    return %arg0, %c0_i32 : i32, i32
  }
  func.func @transform_4(%arg0: i32) -> (i32, i32) {
    %c0_i32 = arith.constant 0 : i32
    %c0_i32_0 = arith.constant 0 : i32
    return %arg0, %c0_i32 : i32, i32
  }
  func.func @transform_5(%arg0: i32) -> (i32, i32) {
    %c0_i32 = arith.constant 0 : i32
    %c0_i32_0 = arith.constant 0 : i32
    %c0_i32_1 = arith.constant 0 : i32
    return %c0_i32, %c0_i32_0 : i32, i32
  }
  func.func @transform_6(%arg0: i32) -> (i32, i32) {
    %c0_i32 = arith.constant 0 : i32
    %c0_i32_0 = arith.constant 0 : i32
    %c0_i32_1 = arith.constant 0 : i32
    return %c0_i32, %c0_i32_0 : i32, i32
  }
  func.func @transform_7(%arg0: i32) -> (i32, i32) {
    %c0_i32 = arith.constant 0 : i32
    %c0_i32_0 = arith.constant 0 : i32
    %c0_i32_1 = arith.constant 0 : i32
    return %c0_i32, %c0_i32_0 : i32, i32
  }
  func.func @transform_8(%arg0: i32) -> (i32, i32) {
    %c0_i32 = arith.constant 0 : i32
    %c0_i32_0 = arith.constant 0 : i32
    %c0_i32_1 = arith.constant 0 : i32
    return %c0_i32, %c0_i32_0 : i32, i32
  }
  func.func @transform_9(%arg0: i32) -> (i32, i32) {
    %c0_i32 = arith.constant 0 : i32
    %c0_i32_0 = arith.constant 0 : i32
    return %arg0, %c0_i32 : i32, i32
  }
  func.func @transform_10(%arg0: i32) -> (i32, i32) {
    %c0_i32 = arith.constant 0 : i32
    %c0_i32_0 = arith.constant 0 : i32
    return %arg0, %c0_i32 : i32, i32
  }
}

</mosaic_0001>

<llo_original>
// kernel: tpu_custom_call.1
$region0: #{tpu_custom_call.1}
  #allocation0 [shape = 'u32[]', space=smem, size = 0x4, offset = 0x4, fixed_abs, tag = 'smem constant byte address 0x4 - core index']
  #allocation1 [shape = 'u32[144,128]{1,0:T(1,128)}', space=vmem, size = 0x12000, scoped, tag = 'internal scratch']
  %s0 = inlined_call_operand.hbm [shape: f32[8,48], index: 0, kind: input, shape index: {}]
  %s1 = inlined_call_operand.hbm [shape: f32[8,32], index: 1, kind: input, shape index: {}]
  %s2 = inlined_call_operand.hbm [shape: f32[8,32], index: 2, kind: input, shape index: {}]
  %s3 = inlined_call_operand.hbm [shape: f32[8,32], index: 3, kind: input, shape index: {}]
  %s4 = inlined_call_operand.hbm [shape: f32[8,32], index: 4, kind: input, shape index: {}]
  %s5 = inlined_call_operand.hbm [shape: f32[48,160], index: 5, kind: input, shape index: {}]
  %s6 = inlined_call_operand.hbm [shape: f32[32,160], index: 6, kind: input, shape index: {}]
  %s7 = inlined_call_operand.hbm [shape: f32[32,160], index: 7, kind: input, shape index: {}]
  %s8 = inlined_call_operand.vmem [shape: f32[1,160], index: 8, kind: input, shape index: {}]
  %s9 = inlined_call_operand.hbm [shape: f32[8,32], index: 9, kind: output, shape index: {0}]
  %s10 = inlined_call_operand.hbm [shape: f32[8,32], index: 10, kind: output, shape index: {1}]
  %11 = xla_tuple %s9, %s10
  %s12 = sld [smem:[#allocation0]]
  $region86: #{tpu_custom_call.1} parent=0
    _
  %s14 = ssub.s32 1, %s12
  %s15 = scalar_select 0, %s14, %s12
  $region1: #{tpu_custom_call.1} parent=0
    #allocation2 [shape = 'u8[4096]{0}', space=vmem, size = 0x1000, scoped, tag = 'input window, operand 0, single buffered']
    #allocation3 [shape = 's32[1]{0}', space=sflag, size = 0x4, scoped, tag = 'scoped memory for tpu_custom_call.1']
    #allocation4 [shape = 's32[1]{0}', space=sflag, size = 0x4, scoped, tag = 'scoped memory for tpu_custom_call.1']
    #allocation5 [shape = 'u8[4096]{0}', space=vmem, size = 0x1000, scoped, tag = 'input window, operand 1, single buffered']
    #allocation6 [shape = 's32[1]{0}', space=sflag, size = 0x4, scoped, tag = 'scoped memory for tpu_custom_call.1']
    #allocation7 [shape = 'u8[4096]{0}', space=vmem, size = 0x1000, scoped, tag = 'input window, operand 2, single buffered']
    #allocation8 [shape = 'u8[4096]{0}', space=vmem, size = 0x1000, scoped, tag = 'input window, operand 3, single buffered']
    #allocation9 [shape = 's32[1]{0}', space=sflag, size = 0x4, scoped, tag = 'scoped memory for tpu_custom_call.1']
    #allocation10 [shape = 'u8[4096]{0}', space=vmem, size = 0x1000, scoped, tag = 'input window, operand 4, single buffered']
    #allocation11 [shape = 'u8[49152]{0}', space=vmem, size = 0xc000, scoped, tag = 'input window, operand 5, single buffered']
    #allocation12 [shape = 's32[1]{0}', space=sflag, size = 0x4, scoped, tag = 'scoped memory for tpu_custom_call.1']
    #allocation13 [shape = 'u8[32768]{0}', space=vmem, size = 0x8000, scoped, tag = 'input window, operand 6, single buffered']
    #allocation14 [shape = 'u8[32768]{0}', space=vmem, size = 0x8000, scoped, tag = 'input window, operand 7, single buffered']
    #allocation15 [shape = 's32[1]{0}', space=sflag, size = 0x4, scoped, tag = 'scoped memory for tpu_custom_call.1']
    #allocation16 [shape = 'u8[4096]{0}', space=vmem, size = 0x1000, scoped, tag = 'output window, operand 0, single buffered']
    #allocation17 [shape = 'u8[4096]{0}', space=vmem, size = 0x1000, scoped, tag = 'output window, operand 1, single buffered']
    #allocation18 [shape = 's32[1]{0}', space=sflag, size = 0x4, scoped, tag = 'scoped memory for tpu_custom_call.1']
    %16 = vsyncpa [#allocation3], 0
    %17 = vsyncpa [#allocation6], 0
    %18 = vsyncpa [#allocation9], 0
    %19 = vsyncpa [#allocation12], 0
    %20 = vsyncpa [#allocation15], 0
    %21 = vsyncpa [#allocation4], 0
    %22 = vsyncpa [#allocation18], 0
    // Predicated region
    $region2: #{tpu_custom_call.1} parent=1 // pred_check
      _
    $region3: #{tpu_custom_call.1} parent=1 // pred_check_branch
      %24 = sbr.rel (0) target = $region5
    $region4: #{tpu_custom_call.1} parent=1 // pred_region
      %s26 = ssub.s32 128, 128
      %27 = vsyncadd [#allocation3], %s26
      %s29 = sshll.u32 [#allocation2], 4
      %s30 = int_to_ptr.vmem [resolvable:$true] %s29
      %32 = dma.hbm_to_vmem [thread:$0]  %s0, 128, %s30, [#allocation3]
    $region5: #{tpu_custom_call.1} parent=1 // pred_fallthru
      _
    // Predicated region
    $region6: #{tpu_custom_call.1} parent=1 // pred_check
      _
    $region7: #{tpu_custom_call.1} parent=1 // pred_check_branch
      %34 = sbr.rel (0) target = $region9
    $region8: #{tpu_custom_call.1} parent=1 // pred_region
      %s36 = ssub.s32 128, 128
      %37 = vsyncadd [#allocation6], %s36
      %s39 = sshll.u32 [#allocation5], 4
      %s40 = int_to_ptr.vmem [resolvable:$true] %s39
      %42 = dma.hbm_to_vmem [thread:$0]  %s1, 128, %s40, [#allocation6]
    $region9: #{tpu_custom_call.1} parent=1 // pred_fallthru
      _
    // Predicated region
    $region10: #{tpu_custom_call.1} parent=1 // pred_check
      _
    $region11: #{tpu_custom_call.1} parent=1 // pred_check_branch
      %44 = sbr.rel (0) target = $region13
    $region12: #{tpu_custom_call.1} parent=1 // pred_region
      %s46 = ssub.s32 128, 128
      %47 = vsyncadd [#allocation6], %s46
      %s49 = sshll.u32 [#allocation7], 4
      %s50 = int_to_ptr.vmem [resolvable:$true] %s49
      %52 = dma.hbm_to_vmem [thread:$0]  %s2, 128, %s50, [#allocation6]
    $region13: #{tpu_custom_call.1} parent=1 // pred_fallthru
      _
    // Predicated region
    $region14: #{tpu_custom_call.1} parent=1 // pred_check
      _
    $region15: #{tpu_custom_call.1} parent=1 // pred_check_branch
      %54 = sbr.rel (0) target = $region17
    $region16: #{tpu_custom_call.1} parent=1 // pred_region
      %s56 = ssub.s32 128, 128
      %57 = vsyncadd [#allocation9], %s56
      %s59 = sshll.u32 [#allocation8], 4
      %s60 = int_to_ptr.vmem [resolvable:$true] %s59
      %62 = dma.hbm_to_vmem [thread:$0]  %s3, 128, %s60, [#allocation9]
    $region17: #{tpu_custom_call.1} parent=1 // pred_fallthru
      _
    // Predicated region
    $region18: #{tpu_custom_call.1} parent=1 // pred_check
      _
    $region19: #{tpu_custom_call.1} parent=1 // pred_check_branch
      %64 = sbr.rel (0) target = $region21
    $region20: #{tpu_custom_call.1} parent=1 // pred_region
      %s66 = ssub.s32 128, 128
      %67 = vsyncadd [#allocation9], %s66
      %s69 = sshll.u32 [#allocation10], 4
      %s70 = int_to_ptr.vmem [resolvable:$true] %s69
      %72 = dma.hbm_to_vmem [thread:$0]  %s4, 128, %s70, [#allocation9]
    $region21: #{tpu_custom_call.1} parent=1 // pred_fallthru
      _
    // Predicated region
    $region22: #{tpu_custom_call.1} parent=1 // pred_check
      _
    $region23: #{tpu_custom_call.1} parent=1 // pred_check_branch
      %74 = sbr.rel (0) target = $region25
    $region24: #{tpu_custom_call.1} parent=1 // pred_region
      %s76 = ssub.s32 1536, 1536
      %77 = vsyncadd [#allocation12], %s76
      %s78 = sshll.u32 [#allocation11], 4
      %s79 = int_to_ptr.vmem [resolvable:$true] %s78
      %84 = dma.hbm_to_vmem [thread:$0]  %s5, 1536, %s79, [#allocation12], 256, 256, 16
    $region25: #{tpu_custom_call.1} parent=1 // pred_fallthru
      _
    // Predicated region
    $region26: #{tpu_custom_call.1} parent=1 // pred_check
      _
    $region27: #{tpu_custom_call.1} parent=1 // pred_check_branch
      %86 = sbr.rel (0) target = $region29
    $region28: #{tpu_custom_call.1} parent=1 // pred_region
      %s88 = ssub.s32 1024, 1024
      %89 = vsyncadd [#allocation12], %s88
      %s90 = sshll.u32 [#allocation13], 4
      %s91 = int_to_ptr.vmem [resolvable:$true] %s90
      %96 = dma.hbm_to_vmem [thread:$0]  %s6, 1024, %s91, [#allocation12], 256, 256, 16
    $region29: #{tpu_custom_call.1} parent=1 // pred_fallthru
      _
    // Predicated region
    $region30: #{tpu_custom_call.1} parent=1 // pred_check
      _
    $region31: #{tpu_custom_call.1} parent=1 // pred_check_branch
      %98 = sbr.rel (0) target = $region33
    $region32: #{tpu_custom_call.1} parent=1 // pred_region
      %s100 = ssub.s32 1024, 1024
      %101 = vsyncadd [#allocation15], %s100
      %s102 = sshll.u32 [#allocation14], 4
      %s103 = int_to_ptr.vmem [resolvable:$true] %s102
      %108 = dma.hbm_to_vmem [thread:$0]  %s7, 1024, %s103, [#allocation15], 256, 256, 16
    $region33: #{tpu_custom_call.1} parent=1 // pred_fallthru
      _
    // Predicated region
    $region34: #{tpu_custom_call.1} parent=1 // pred_check
      _
    $region35: #{tpu_custom_call.1} parent=1 // pred_check_branch
      %110 = sbr.rel (0) target = $region37
    $region36: #{tpu_custom_call.1} parent=1 // pred_region
      _
    $region37: #{tpu_custom_call.1} parent=1 // pred_fallthru
      _
    // Predicated region
    $region38: #{tpu_custom_call.1} parent=1 // pred_check
      _
    $region39: #{tpu_custom_call.1} parent=1 // pred_check_branch
      %112 = sbr.rel (0) target = $region41
    $region40: #{tpu_custom_call.1} parent=1 // pred_region
      %113 = dma.done [#allocation3], 128
    $region41: #{tpu_custom_call.1} parent=1 // pred_fallthru
      _
    // Predicated region
    $region42: #{tpu_custom_call.1} parent=1 // pred_check
      _
    $region43: #{tpu_custom_call.1} parent=1 // pred_check_branch
      %115 = sbr.rel (0) target = $region45
    $region44: #{tpu_custom_call.1} parent=1 // pred_region
      %116 = dma.done [#allocation6], 128
    $region45: #{tpu_custom_call.1} parent=1 // pred_fallthru
      _
    // Predicated region
    $region46: #{tpu_custom_call.1} parent=1 // pred_check
      _
    $region47: #{tpu_custom_call.1} parent=1 // pred_check_branch
      %118 = sbr.rel (0) target = $region49
    $region48: #{tpu_custom_call.1} parent=1 // pred_region
      %119 = dma.done [#allocation6], 128
    $region49: #{tpu_custom_call.1} parent=1 // pred_fallthru
      _
    // Predicated region
    $region50: #{tpu_custom_call.1} parent=1 // pred_check
      _
    $region51: #{tpu_custom_call.1} parent=1 // pred_check_branch
      %121 = sbr.rel (0) target = $region53
    $region52: #{tpu_custom_call.1} parent=1 // pred_region
      %122 = dma.done [#allocation9], 128
    $region53: #{tpu_custom_call.1} parent=1 // pred_fallthru
      _
    // Predicated region
    $region54: #{tpu_custom_call.1} parent=1 // pred_check
      _
    $region55: #{tpu_custom_call.1} parent=1 // pred_check_branch
      %124 = sbr.rel (0) target = $region57
    $region56: #{tpu_custom_call.1} parent=1 // pred_region
      %125 = dma.done [#allocation9], 128
    $region57: #{tpu_custom_call.1} parent=1 // pred_fallthru
      _
    // Predicated region
    $region58: #{tpu_custom_call.1} parent=1 // pred_check
      _
    $region59: #{tpu_custom_call.1} parent=1 // pred_check_branch
      %127 = sbr.rel (0) target = $region61
    $region60: #{tpu_custom_call.1} parent=1 // pred_region
      %128 = dma.done [#allocation12], 1536
    $region61: #{tpu_custom_call.1} parent=1 // pred_fallthru
      _
    // Predicated region
    $region62: #{tpu_custom_call.1} parent=1 // pred_check
      _
    $region63: #{tpu_custom_call.1} parent=1 // pred_check_branch
      %130 = sbr.rel (0) target = $region65
    $region64: #{tpu_custom_call.1} parent=1 // pred_region
      %131 = dma.done [#allocation12], 1024
    $region65: #{tpu_custom_call.1} parent=1 // pred_fallthru
      _
    // Predicated region
    $region66: #{tpu_custom_call.1} parent=1 // pred_check
      _
    $region67: #{tpu_custom_call.1} parent=1 // pred_check_branch
      %133 = sbr.rel (0) target = $region69
    $region68: #{tpu_custom_call.1} parent=1 // pred_region
      %134 = dma.done [#allocation15], 1024
    $region69: #{tpu_custom_call.1} parent=1 // pred_fallthru
      _
    %v135 = vld [vmem:[#allocation2] sm:$0xff]
    %v136 = vld [vmem:[#allocation11] sm:$0xff]
    %v137 = vld [vmem:[#allocation11 + $0x8] sm:$0xff]
    %v138 = vld [vmem:[#allocation11 + $0x10] sm:$0xff]
    %v139 = vld [vmem:[#allocation11 + $0x18] sm:$0xff]
    %v140 = vld [vmem:[#allocation11 + $0x20] sm:$0xff]
    %v141 = vld [vmem:[#allocation11 + $0x28] sm:$0xff]
    %v142 = vld [vmem:[#allocation11 + $0x30] sm:$0xff]
    %v143 = vld [vmem:[#allocation11 + $0x38] sm:$0xff]
    %v144 = vld [vmem:[#allocation11 + $0x40] sm:$0xff]
    %v145 = vld [vmem:[#allocation11 + $0x48] sm:$0xff]
    %v146 = vld [vmem:[#allocation11 + $0x50] sm:$0xff]
    %v147 = vld [vmem:[#allocation11 + $0x58] sm:$0xff]
    %v148 = vld [vmem:[#allocation5] sm:$0xff]
    %v149 = vld [vmem:[#allocation13] sm:$0xff]
    %v150 = vld [vmem:[#allocation13 + $0x8] sm:$0xff]
    %v151 = vld [vmem:[#allocation13 + $0x10] sm:$0xff]
    %v152 = vld [vmem:[#allocation13 + $0x18] sm:$0xff]
    %v153 = vld [vmem:[#allocation13 + $0x20] sm:$0xff]
    %v154 = vld [vmem:[#allocation13 + $0x28] sm:$0xff]
    %v155 = vld [vmem:[#allocation13 + $0x30] sm:$0xff]
    %v156 = vld [vmem:[#allocation13 + $0x38] sm:$0xff]
    %vm157 = vcmask 261120
    %v159 = vsel %vm157, %v148, 0
    %161 = vmatprep.subr.mxu0 0.0
    %162 = vmatpush1.msra.mxu0 0.0
    %163 = vmatprep.subr.mxu0 0.0
    %164 = vmatpush1.msra.mxu0 0.0
    %165 = vmatprep.subr.mxu0 0.0
    %166 = vmatpush1.msra.mxu0 0.0
    %167 = vmatprep.subr.mxu0 0.0
    %168 = vmatpush1.msra.mxu0 0.0
    %169 = vmatprep.subr.mxu0 0.0
    %170 = vmatpush1.msra.mxu0 0.0
    %171 = vmatprep.subr.mxu0 0.0
    %172 = vmatpush1.msra.mxu0 0.0
    %173 = vmatprep.subr.mxu0 0.0
    %174 = vmatpush1.msra.mxu0 0.0
    %175 = vmatprep.subr.mxu0 0.0
    %176 = vmatpush1.msra.mxu0 0.0
    %177 = vmatprep.subr.mxu0 0.0
    %178 = vmatpush1.msra.mxu0 0.0
    %179 = vmatprep.subr.mxu0 0.0
    %180 = vmatpush1.msra.mxu0 0.0
    %181 = vmatprep.subr.mxu0 0.0
    %182 = vmatpush1.msra.mxu0 0.0
    %183 = vmatprep.subr.mxu0 0.0
    %184 = vmatpush1.msra.mxu0 0.0
    %185 = vmatprep.subr.mxu0 %v156
    %186 = vmatpush1.msra.mxu0 %v155
    %187 = vmatprep.subr.mxu0 %v154
    %188 = vmatpush1.msra.mxu0 %v153
    %189 = vmatprep.subr.mxu0 %v152
    %190 = vmatpush1.msra.mxu0 %v151
    %191 = vmatprep.subr.mxu0 %v150
    %192 = vmatpush1.msra.mxu0 %v149
    %193 = vmatprep.subr.mxu0 0.0
    %194 = vmatpush2.msra.mxu0 0.0
    %195 = vmatprep.subr.mxu0 0.0
    %196 = vmatpush2.msra.mxu0 0.0
    %197 = vmatprep.subr.mxu0 0.0
    %198 = vmatpush2.msra.mxu0 0.0
    %199 = vmatprep.subr.mxu0 0.0
    %200 = vmatpush2.msra.mxu0 0.0
    %201 = vmatprep.subr.mxu0 0.0
    %202 = vmatpush2.msra.mxu0 0.0
    %203 = vmatprep.subr.mxu0 0.0
    %204 = vmatpush2.msra.mxu0 0.0
    %205 = vmatprep.subr.mxu0 0.0
    %206 = vmatpush2.msra.mxu0 0.0
    %207 = vmatprep.subr.mxu0 0.0
    %208 = vmatpush2.msra.mxu0 0.0
    %209 = vmatprep.subr.mxu0 0.0
    %210 = vmatpush2.msra.mxu0 0.0
    %211 = vmatprep.subr.mxu0 0.0
    %212 = vmatpush2.msra.mxu0 0.0
    %213 = vmatprep.subr.mxu0 0.0
    %214 = vmatpush2.msra.mxu0 0.0
    %215 = vmatprep.subr.mxu0 0.0
    %216 = vmatpush2.msra.mxu0 0.0
    %217 = vmatprep.subr.mxu0 0.0
    %218 = vmatpush2.msra.mxu0 0.0
    %219 = vmatprep.subr.mxu0 0.0
    %220 = vmatpush2.msra.mxu0 0.0
    %221 = vmatprep.subr.mxu0 0.0
    %222 = vmatpush2.msra.mxu0 0.0
    %223 = vmatprep.subr.mxu0 0.0
    %224 = vmatpush2.msra.mxu0 0.0
    %225 = vmatprep.mubr.f32.mxu0 0.0
    %226 = vmatmul.mubr.f32.gmra.mxu0 %v159
    %v227 = vpop.f32.mrf.mxu0
    %v228 = vadd.f32 0.0, %v227
    %v229 = vpop.f32.mrf.mxu0
    %v230 = vadd.f32 0.0, %v229
    %231 = vdwg.mxu0
    %vm232 = vcmask 392192
    %v234 = vsel %vm232, %v135, 0
    %236 = vmatprep.subr.mxu0 0.0
    %237 = vmatpush1.msra.mxu0 0.0
    %238 = vmatprep.subr.mxu0 0.0
    %239 = vmatpush1.msra.mxu0 0.0
    %240 = vmatprep.subr.mxu0 0.0
    %241 = vmatpush1.msra.mxu0 0.0
    %242 = vmatprep.subr.mxu0 0.0
    %243 = vmatpush1.msra.mxu0 0.0
    %244 = vmatprep.subr.mxu0 0.0
    %245 = vmatpush1.msra.mxu0 0.0
    %246 = vmatprep.subr.mxu0 0.0
    %247 = vmatpush1.msra.mxu0 0.0
    %248 = vmatprep.subr.mxu0 0.0
    %249 = vmatpush1.msra.mxu0 0.0
    %250 = vmatprep.subr.mxu0 0.0
    %251 = vmatpush1.msra.mxu0 0.0
    %252 = vmatprep.subr.mxu0 0.0
    %253 = vmatpush1.msra.mxu0 0.0
    %254 = vmatprep.subr.mxu0 0.0
    %255 = vmatpush1.msra.mxu0 0.0
    %256 = vmatprep.subr.mxu0 %v147
    %257 = vmatpush1.msra.mxu0 %v146
    %258 = vmatprep.subr.mxu0 %v145
    %259 = vmatpush1.msra.mxu0 %v144
    %260 = vmatprep.subr.mxu0 %v143
    %261 = vmatpush1.msra.mxu0 %v142
    %262 = vmatprep.subr.mxu0 %v141
    %263 = vmatpush1.msra.mxu0 %v140
    %264 = vmatprep.subr.mxu0 %v139
    %265 = vmatpush1.msra.mxu0 %v138
    %266 = vmatprep.subr.mxu0 %v137
    %267 = vmatpush1.msra.mxu0 %v136
    %268 = vmatprep.subr.mxu0 0.0
    %269 = vmatpush2.msra.mxu0 0.0
    %270 = vmatprep.subr.mxu0 0.0
    %271 = vmatpush2.msra.mxu0 0.0
    %272 = vmatprep.subr.mxu0 0.0
    %273 = vmatpush2.msra.mxu0 0.0
    %274 = vmatprep.subr.mxu0 0.0
    %275 = vmatpush2.msra.mxu0 0.0
    %276 = vmatprep.subr.mxu0 0.0
    %277 = vmatpush2.msra.mxu0 0.0
    %278 = vmatprep.subr.mxu0 0.0
    %279 = vmatpush2.msra.mxu0 0.0
    %280 = vmatprep.subr.mxu0 0.0
    %281 = vmatpush2.msra.mxu0 0.0
    %282 = vmatprep.subr.mxu0 0.0
    %283 = vmatpush2.msra.mxu0 0.0
    %284 = vmatprep.subr.mxu0 0.0
    %285 = vmatpush2.msra.mxu0 0.0
    %286 = vmatprep.subr.mxu0 0.0
    %287 = vmatpush2.msra.mxu0 0.0
    %288 = vmatprep.subr.mxu0 0.0
    %289 = vmatpush2.msra.mxu0 0.0
    %290 = vmatprep.subr.mxu0 0.0
    %291 = vmatpush2.msra.mxu0 0.0
    %292 = vmatprep.subr.mxu0 0.0
    %293 = vmatpush2.msra.mxu0 0.0
    %294 = vmatprep.subr.mxu0 0.0
    %295 = vmatpush2.msra.mxu0 0.0
    %296 = vmatprep.subr.mxu0 0.0
    %297 = vmatpush2.msra.mxu0 0.0
    %298 = vmatprep.subr.mxu0 0.0
    %299 = vmatpush2.msra.mxu0 0.0
    %300 = vmatprep.mubr.f32.mxu0 0.0
    %301 = vmatmul.mubr.f32.gmra.mxu0 %v234
    %v302 = vpop.f32.mrf.mxu0
    %v303 = vadd.f32 %v228, %v302
    %v304 = vpop.f32.mrf.mxu0
    %v305 = vadd.f32 %v230, %v304
    %306 = vdwg.mxu0
    %v307 = vld [vmem:[#allocation7] sm:$0xff]
    %v308 = vld [vmem:[#allocation14] sm:$0xff]
    %v309 = vld [vmem:[#allocation14 + $0x8] sm:$0xff]
    %v310 = vld [vmem:[#allocation14 + $0x10] sm:$0xff]
    %v311 = vld [vmem:[#allocation14 + $0x18] sm:$0xff]
    %v312 = vld [vmem:[#allocation14 + $0x20] sm:$0xff]
    %v313 = vld [vmem:[#allocation14 + $0x28] sm:$0xff]
    %v314 = vld [vmem:[#allocation14 + $0x30] sm:$0xff]
    %v315 = vld [vmem:[#allocation14 + $0x38] sm:$0xff]
    %v317 = vsel %vm157, %v307, 0
    %319 = vmatprep.subr.mxu0 0.0
    %320 = vmatpush1.msra.mxu0 0.0
    %321 = vmatprep.subr.mxu0 0.0
    %322 = vmatpush1.msra.mxu0 0.0
    %323 = vmatprep.subr.mxu0 0.0
    %324 = vmatpush1.msra.mxu0 0.0
    %325 = vmatprep.subr.mxu0 0.0
    %326 = vmatpush1.msra.mxu0 0.0
    %327 = vmatprep.subr.mxu0 0.0
    %328 = vmatpush1.msra.mxu0 0.0
    %329 = vmatprep.subr.mxu0 0.0
    %330 = vmatpush1.msra.mxu0 0.0
    %331 = vmatprep.subr.mxu0 0.0
    %332 = vmatpush1.msra.mxu0 0.0
    %333 = vmatprep.subr.mxu0 0.0
    %334 = vmatpush1.msra.mxu0 0.0
    %335 = vmatprep.subr.mxu0 0.0
    %336 = vmatpush1.msra.mxu0 0.0
    %337 = vmatprep.subr.mxu0 0.0
    %338 = vmatpush1.msra.mxu0 0.0
    %339 = vmatprep.subr.mxu0 0.0
    %340 = vmatpush1.msra.mxu0 0.0
    %341 = vmatprep.subr.mxu0 0.0
    %342 = vmatpush1.msra.mxu0 0.0
    %343 = vmatprep.subr.mxu0 %v315
    %344 = vmatpush1.msra.mxu0 %v314
    %345 = vmatprep.subr.mxu0 %v313
    %346 = vmatpush1.msra.mxu0 %v312
    %347 = vmatprep.subr.mxu0 %v311
    %348 = vmatpush1.msra.mxu0 %v310
    %349 = vmatprep.subr.mxu0 %v309
    %350 = vmatpush1.msra.mxu0 %v308
    %351 = vmatprep.subr.mxu0 0.0
    %352 = vmatpush2.msra.mxu0 0.0
    %353 = vmatprep.subr.mxu0 0.0
    %354 = vmatpush2.msra.mxu0 0.0
    %355 = vmatprep.subr.mxu0 0.0
    %356 = vmatpush2.msra.mxu0 0.0
    %357 = vmatprep.subr.mxu0 0.0
    %358 = vmatpush2.msra.mxu0 0.0
    %359 = vmatprep.subr.mxu0 0.0
    %360 = vmatpush2.msra.mxu0 0.0
    %361 = vmatprep.subr.mxu0 0.0
    %362 = vmatpush2.msra.mxu0 0.0
    %363 = vmatprep.subr.mxu0 0.0
    %364 = vmatpush2.msra.mxu0 0.0
    %365 = vmatprep.subr.mxu0 0.0
    %366 = vmatpush2.msra.mxu0 0.0
    %367 = vmatprep.subr.mxu0 0.0
    %368 = vmatpush2.msra.mxu0 0.0
    %369 = vmatprep.subr.mxu0 0.0
    %370 = vmatpush2.msra.mxu0 0.0
    %371 = vmatprep.subr.mxu0 0.0
    %372 = vmatpush2.msra.mxu0 0.0
    %373 = vmatprep.subr.mxu0 0.0
    %374 = vmatpush2.msra.mxu0 0.0
    %375 = vmatprep.subr.mxu0 0.0
    %376 = vmatpush2.msra.mxu0 0.0
    %377 = vmatprep.subr.mxu0 0.0
    %378 = vmatpush2.msra.mxu0 0.0
    %379 = vmatprep.subr.mxu0 0.0
    %380 = vmatpush2.msra.mxu0 0.0
    %381 = vmatprep.subr.mxu0 0.0
    %382 = vmatpush2.msra.mxu0 0.0
    %383 = vmatprep.mubr.f32.mxu0 0.0
    %384 = vmatmul.mubr.f32.gmra.mxu0 %v317
    %v385 = vpop.f32.mrf.mxu0
    %v386 = vadd.f32 0.0, %v385
    %v387 = vpop.f32.mrf.mxu0
    %v388 = vadd.f32 0.0, %v387
    %389 = vdwg.mxu0
    %v390 = vadd.f32 %v303, %v386
    %v391 = vadd.f32 %v305, %v388
    %v392 = vld [vmem:[%s8] sm:$0x3]
    %v394 = vlaneseq
    %v395 = vshrl.u32 %v394, 7
    %v396 = vsub.s32 0, %v395
    %v397 = vrot.slane %v392, %v396
    %v398 = vlaneseq
    %v399 = vshrl.u32 %v398, 7
    %v400 = vsub.s32 1, %v399
    %v401 = vrot.slane %v392, %v400
    %v404 = vadd.f32 %v390, %v397
    %v405 = vadd.f32 %v391, %v401
    %v406 = vxor.u32 %v404, 2147483648
    %v407 = vmul.f32 %v406, 1.442695
    %v408 = vpow.pop %v407
    %v409 = vadd.f32 %v408, 1.0
    %v410 = vrcp.pop %v409
    %v411 = vmul.f32 1.0, %v410
    %v412 = vtanh.pop %v404
    %v413 = vxor.u32 %v405, 2147483648
    %v414 = vmul.f32 %v413, 1.442695
    %v415 = vpow.pop %v414
    %v416 = vadd.f32 %v415, 1.0
    %v417 = vrcp.pop %v416
    %v418 = vmul.f32 1.0, %v417
    %420 = vrot.lane.b32.xlu0 %v412, 64
    %v421 = vpop.permute.xlu0 %420
    %v423 = vmul.f32 %v411, %v421
    %v424 = vld [vmem:[#allocation8] sm:$0xff]
    %426 = vrot.lane.b32.xlu0 %v424, 96
    %v427 = vpop.permute.xlu0 %426
    %v429 = vmul.f32 %v411, %v427
    %431 = vrot.lane.b32.xlu0 %v429, 32
    %v432 = vpop.permute.xlu0 %431
    %v434 = vadd.f32 %v423, %v432
    %v435 = vld [vmem:[#allocation10] sm:$0xff]
    %v436 = vmul.f32 %v418, %v435
    %v437 = vadd.f32 %v434, %v436
    %v438 = vtanh.pop %v437
    %440 = vrot.lane.b32.xlu0 %v438, 32
    %v441 = vpop.permute.xlu0 %440
    %v443 = vmul.f32 %v411, %v441
    %445 = vrot.lane.b32.xlu0 %v443, 96
    %v446 = vpop.permute.xlu0 %445
    %448 = vst.msk [vmem:[#allocation16] sm:$0xff] %vm157, %v446
    %449 = vst.msk [vmem:[#allocation17] sm:$0xff] %vm157, %v437
    // Predicated region
    $region70: #{tpu_custom_call.1} parent=1 // pred_check
      _
    $region71: #{tpu_custom_call.1} parent=1 // pred_check_branch
      %451 = sbr.rel (0) target = $region73
    $region72: #{tpu_custom_call.1} parent=1 // pred_region
      %s453 = ssub.s32 128, 128
      %454 = vsyncadd [#allocation4], %s453
      %s456 = sshll.u32 [#allocation16], 4
      %s457 = int_to_ptr.vmem [resolvable:$true] %s456
      %459 = dma.vmem_to_hbm [thread:$0]  %s457, 128, %s9, [#allocation4]
    $region73: #{tpu_custom_call.1} parent=1 // pred_fallthru
      _
    // Predicated region
    $region74: #{tpu_custom_call.1} parent=1 // pred_check
      _
    $region75: #{tpu_custom_call.1} parent=1 // pred_check_branch
      %461 = sbr.rel (0) target = $region77
    $region76: #{tpu_custom_call.1} parent=1 // pred_region
      %s463 = ssub.s32 128, 128
      %464 = vsyncadd [#allocation18], %s463
      %s466 = sshll.u32 [#allocation17], 4
      %s467 = int_to_ptr.vmem [resolvable:$true] %s466
      %469 = dma.vmem_to_hbm [thread:$0]  %s467, 128, %s10, [#allocation18]
    $region77: #{tpu_custom_call.1} parent=1 // pred_fallthru
      _
    // Predicated region
    $region78: #{tpu_custom_call.1} parent=1 // pred_check
      _
    $region79: #{tpu_custom_call.1} parent=1 // pred_check_branch
      %471 = sbr.rel (0) target = $region81
    $region80: #{tpu_custom_call.1} parent=1 // pred_region
      %472 = dma.done [#allocation4], 128
    $region81: #{tpu_custom_call.1} parent=1 // pred_fallthru
      _
    // Predicated region
    $region82: #{tpu_custom_call.1} parent=1 // pred_check
      _
    $region83: #{tpu_custom_call.1} parent=1 // pred_check_branch
      %474 = sbr.rel (0) target = $region85
    $region84: #{tpu_custom_call.1} parent=1 // pred_region
      %475 = dma.done [#allocation18], 128
    $region85: #{tpu_custom_call.1} parent=1 // pred_fallthru
      _
    %476 = vsyncpa [#allocation3], 1
    %477 = vsyncpa [#allocation6], 1
    %478 = vsyncpa [#allocation9], 1
    %479 = vsyncpa [#allocation12], 1
    %480 = vsyncpa [#allocation15], 1
    %481 = vsyncpa [#allocation4], 1
    %482 = vsyncpa [#allocation18], 1

</llo_original>
